<compile_context>
chip_gen: v7x
topology: tpu7x:2x2x1
jax: 0.10.0
libtpu: 0.0.40
codegen_flags: <defaults>
</compile_context>

<pallas_src>
import functools

import jax
import jax.numpy as jnp
from jax import lax
from jax.experimental import pallas as pl
from jax.experimental.pallas import tpu as pltpu


def _round_up(x, m):
    return ((x + m - 1) // m) * m


# ---------------------------------------------------------------------------
# Kernel bodies
# ---------------------------------------------------------------------------

def _mlp_df(x_bf16, bias1, w1, w2, b2):
    """df = tanh(x @ W1 + bias1) @ W2 + b2.

    bf16 MXU matmuls with f32 accumulation; bias1 already folds (b1 + t) so the
    first layer does a single [tb,H] VPU add for the scalar-t paths.
    """
    h = jnp.tanh(
        jnp.dot(x_bf16, w1, preferred_element_type=jnp.float32) + bias1)      # [tb,H] f32
    return jnp.dot(h.astype(jnp.bfloat16), w2,
                   preferred_element_type=jnp.float32) + b2                   # [tb,D] f32


def _node_df_kernel(t_sm, x_ref, w1_ref, b1_ref, w2_ref, b2_ref, o_ref):
    # elem_t is None:  out = df(t, x).  t is a uniform scalar held in SMEM.
    t = t_sm[0]
    bias1 = b1_ref[...] + t                              # [1,H]: folded bias+time
    y = _mlp_df(x_ref[...], bias1, w1_ref[...], w2_ref[...], b2_ref[...])
    o_ref[...] = y.astype(o_ref.dtype)


def _node_scaled_kernel(e_ref, x_ref, w1_ref, b1_ref, w2_ref, b2_ref, o_ref):
    # elem_t set:  out = elem_t * df(elem_t, x).  A single [tb,1] column is
    # reused as both the per-row time offset and the output scale.
    t_col = e_ref[...]                                   # [tb,1] f32
    y = _mlp_df(x_ref[...], b1_ref[...] + t_col, w1_ref[...], w2_ref[...],
                b2_ref[...])
    o_ref[...] = (t_col * y).astype(o_ref.dtype)


def _node_euler_kernel(sched_sm, x_ref, w1_ref, b1_ref, w2_ref, b2_ref, o_ref,
                       *, n_steps, unroll):
    # Fused explicit-Euler rollout: the whole solver loop runs inside ONE
    # pallas_call; bf16 weights are loaded once and stay resident in VMEM.
    # Weights are re-read from the VMEM refs inside the body (vld slots have
    # slack) instead of being hoisted into long-lived vregs.
    t0 = sched_sm[0]
    dt = sched_sm[1]

    def body(i, acc):                                    # acc: [tb,D] f32 carry
        t = t0 + dt * i.astype(jnp.float32)
        bias1 = b1_ref[...] + t
        d = _mlp_df(acc.astype(jnp.bfloat16), bias1,
                    w1_ref[...], w2_ref[...], b2_ref[...])
        return acc + dt * d

    x_final = lax.fori_loop(0, n_steps, body,
                            x_ref[...].astype(jnp.float32), unroll=unroll)
    o_ref[...] = x_final.astype(o_ref.dtype)


# ---------------------------------------------------------------------------
# pallas_call wrappers (jitted)
# ---------------------------------------------------------------------------

def _specs(tb, D, H):
    row = lambda i, *_: (i, 0)   # batch-tiled operands
    fix = lambda i, *_: (0, 0)   # same block every step -> weights stay VMEM-resident
    in_specs = [
        pl.BlockSpec((tb, D), row),   # x  (bf16)
        pl.BlockSpec((D, H), fix),    # W1 (bf16)
        pl.BlockSpec((1, H), fix),    # b1 (f32)
        pl.BlockSpec((H, D), fix),    # W2 (bf16)
        pl.BlockSpec((1, D), fix),    # b2 (f32)
    ]
    out_spec = pl.BlockSpec((tb, D), row)
    return in_specs, out_spec


_PARALLEL = pltpu.CompilerParams(dimension_semantics=("parallel",))


def _pad_rows(a, bp):
    B = a.shape[0]
    if bp == B:
        return a
    return jnp.pad(a, ((0, bp - B),) + ((0, 0),) * (a.ndim - 1))


@functools.partial(jax.jit, static_argnames=("tb", "bp"))
def _node_df_call(t_arr, x, w1, b1, w2, b2, *, tb, bp):
    B, D = x.shape
    H = w1.shape[1]
    xb = _pad_rows(x.astype(jnp.bfloat16), bp)
    in_specs, out_spec = _specs(tb, D, H)
    out = pl.pallas_call(
        _node_df_kernel,
        out_shape=jax.ShapeDtypeStruct((bp, D), jnp.bfloat16),
        grid_spec=pltpu.PrefetchScalarGridSpec(
            num_scalar_prefetch=1,          # scalar t -> SMEM, no [B,1] VMEM array
            grid=(bp // tb,),
            in_specs=in_specs,
            out_specs=out_spec,
        ),
        compiler_params=_PARALLEL,
    )(t_arr, xb, w1, b1, w2, b2)
    return out[:B] if bp != B else out


@functools.partial(jax.jit, static_argnames=("tb", "bp"))
def _node_scaled_call(elem_col, x, w1, b1, w2, b2, *, tb, bp):
    B, D = x.shape
    H = w1.shape[1]
    xb = _pad_rows(x.astype(jnp.bfloat16), bp)
    eb = _pad_rows(elem_col, bp)
    in_specs, out_spec = _specs(tb, D, H)
    row = lambda i, *_: (i, 0)
    out = pl.pallas_call(
        _node_scaled_kernel,
        out_shape=jax.ShapeDtypeStruct((bp, D), jnp.bfloat16),
        grid_spec=pltpu.PrefetchScalarGridSpec(
            num_scalar_prefetch=0,
            grid=(bp // tb,),
            in_specs=[pl.BlockSpec((tb, 1), row)] + in_specs,
            out_specs=out_spec,
        ),
        compiler_params=_PARALLEL,
    )(eb, xb, w1, b1, w2, b2)
    return out[:B] if bp != B else out


@functools.partial(jax.jit, static_argnames=("n_steps", "tb", "bp", "unroll"))
def _node_euler_call(sched, x0, w1, b1, w2, b2, *, n_steps, tb, bp, unroll):
    B, D = x0.shape
    H = w1.shape[1]
    xb = _pad_rows(x0.astype(jnp.bfloat16), bp)
    in_specs, out_spec = _specs(tb, D, H)
    kernel = functools.partial(_node_euler_kernel, n_steps=n_steps, unroll=unroll)
    out = pl.pallas_call(
        kernel,
        out_shape=jax.ShapeDtypeStruct((bp, D), jnp.bfloat16),
        grid_spec=pltpu.PrefetchScalarGridSpec(
            num_scalar_prefetch=1,          # [t0, dt] -> SMEM
            grid=(bp // tb,),
            in_specs=in_specs,
            out_specs=out_spec,
        ),
        compiler_params=_PARALLEL,
    )(sched, xb, w1, b1, w2, b2)
    return out[:B] if bp != B else out


# ---------------------------------------------------------------------------
# NODE module (JAX/Pallas port)
# ---------------------------------------------------------------------------

class NODE:
    """Port of the PyTorch NODE wrapper with an MLP df.

    block_b:        target batch tile (sweep 512-2048; mem-bound paths want big tiles).
    min_grid_steps: keep >= this many grid steps when B allows, so the parallel
                    grid axis can shard across the 2 TensorCores on v7x.
    """

    def __init__(self, w1, b1, w2, b2, block_b=1024, min_grid_steps=2):
        # bf16 weights (MXU-native, half the HBM/VMEM traffic); f32 biases.
        self.w1 = jnp.asarray(w1, jnp.bfloat16)
        self.w2 = jnp.asarray(w2, jnp.bfloat16)
        self.b1 = jnp.asarray(b1, jnp.float32).reshape(1, -1)
        self.b2 = jnp.asarray(b2, jnp.float32).reshape(1, -1)
        self.block_b = block_b
        self.min_grid_steps = max(1, min_grid_steps)
        self.nfe = 0
        self.elem_t = None

    def update(self, elem_t):
        # PyTorch: elem_t.view(*elem_t.shape, 1)
        elem_t = jnp.asarray(elem_t)
        self.elem_t = elem_t.reshape(*elem_t.shape, 1)

    def _tile(self, B):
        """Pick (tile, padded_B): tile is a multiple of 8, padded_B a multiple of
        the tile. Never falls back to a single full-array block."""
        tb = min(self.block_b, _round_up(pl.cdiv(B, self.min_grid_steps), 8))
        tb = max(tb, 8)
        bp = _round_up(B, tb)
        return tb, bp

    def forward(self, t, x):
        self.nfe += 1
        B = x.shape[0]
        tb, bp = self._tile(B)
        if self.elem_t is None:
            t_arr = jnp.asarray(t, jnp.float32).reshape(1)
            return _node_df_call(t_arr, x, self.w1, self.b1, self.w2, self.b2,
                                 tb=tb, bp=bp)
        else:
            e_col = self.elem_t.astype(jnp.float32).reshape(B, 1)
            return _node_scaled_call(e_col, x, self.w1, self.b1, self.w2,
                                     self.b2, tb=tb, bp=bp)

    __call__ = forward

    def integrate_euler(self, t0, dt, n_steps, x0):
        """Fused explicit-Euler rollout: all `n_steps` df evaluations inside one
        pallas_call (weights resident), amortizing dispatch/DMA overhead."""
        self.nfe += n_steps
        B = x0.shape[0]
        tb, bp = self._tile(B)
        sched = jnp.asarray([t0, dt], jnp.float32)
        unroll = min(4, max(1, n_steps))     # bounded unroll: no vreg-spill cliff
        return _node_euler_call(sched, x0, self.w1, self.b1, self.w2, self.b2,
                                n_steps=n_steps, tb=tb, bp=bp, unroll=unroll)


# ---------------------------------------------------------------------------
# Pure-JAX reference (same bf16 quantization as the kernels)
# ---------------------------------------------------------------------------

def _df_ref(t_col, x, w1_bf16, b1, w2_bf16, b2):
    h = jnp.tanh(
        jnp.dot(x.astype(jnp.bfloat16), w1_bf16,
                preferred_element_type=jnp.float32) + b1 + t_col)
    return jnp.dot(h.astype(jnp.bfloat16), w2_bf16,
                   preferred_element_type=jnp.float32) + b2


def _close(out_bf16, ref_f32, atol=2e-2, rtol=2e-2):
    return jnp.allclose(out_bf16.astype(jnp.float32), ref_f32, atol=atol, rtol=rtol)


if __name__ == "__main__":
    key = jax.random.PRNGKey(0)
    kx, kw1, kb1, kw2, kb2, kt, kx2 = jax.random.split(key, 7)

    # Lane-dense shapes: feature dims are multiples of 128 (MXU/VPU native).
    B, D, H = 256, 128, 128
    x = jax.random.normal(kx, (B, D), dtype=jnp.float32)
    w1 = jax.random.normal(kw1, (D, H), dtype=jnp.float32) * 0.08
    b1 = jax.random.normal(kb1, (1, H), dtype=jnp.float32) * 0.1
    w2 = jax.random.normal(kw2, (H, D), dtype=jnp.float32) * 0.08
    b2 = jax.random.normal(kb2, (1, D), dtype=jnp.float32) * 0.1

    node = NODE(w1, b1, w2, b2, block_b=1024)
    w1b, w2b, b1r, b2r = node.w1, node.w2, node.b1, node.b2  # bf16/f32 copies for ref

    # Case 1: elem_t is None -> out = df(t, x)
    t = 0.5
    out1 = jax.block_until_ready(node(t, x))
    ref1 = _df_ref(jnp.full((B, 1), t, jnp.float32), x, w1b, b1r, w2b, b2r)
    assert out1.shape == (B, D)
    assert _close(out1, ref1), "mismatch (elem_t=None)"

    # Case 2: after update(elem_t) -> out = elem_t * df(elem_t, x)
    elem_t = jax.random.uniform(kt, (B,), dtype=jnp.float32)
    node.update(elem_t)
    out2 = jax.block_until_ready(node(t, x))
    ref2 = elem_t[:, None] * _df_ref(elem_t[:, None], x, w1b, b1r, w2b, b2r)
    assert _close(out2, ref2), "mismatch (elem_t set)"

    # Case 3: ragged batch (B not a multiple of the tile) -> padding path
    node.elem_t = None
    B3 = 200
    x3 = jax.random.normal(kx2, (B3, D), dtype=jnp.float32)
    out3 = jax.block_until_ready(node(t, x3))
    ref3 = _df_ref(jnp.full((B3, 1), t, jnp.float32), x3, w1b, b1r, w2b, b2r)
    assert out3.shape == (B3, D)
    assert _close(out3, ref3), "mismatch (ragged batch / padding)"

    # Case 4: fused multi-step Euler rollout (solver loop inside one pallas_call)
    n_steps, t0, dt = 8, 0.0, 0.1
    out4 = jax.block_until_ready(node.integrate_euler(t0, dt, n_steps, x))
    xr = x.astype(jnp.bfloat16).astype(jnp.float32)   # kernel carries bf16 x0 input
    for i in range(n_steps):
        ti = jnp.full((B, 1), t0 + dt * i, jnp.float32)
        xr = xr + dt * _df_ref(ti, xr, w1b, b1r, w2b, b2r)
    assert _close(out4, xr, atol=3e-2, rtol=3e-2), "mismatch (fused Euler)"

    assert node.nfe == 3 + n_steps
    print("KERNEL_OK")
</pallas_src>

<mosaic_0001>
module attributes {stable_mosaic.version = 11 : i64} {
  func.func @_node_df_kernel(%arg0: i32, %arg1: memref<1xf32, #tpu.memory_space<smem>>, %arg2: memref<128x128xbf16, #tpu.memory_space<vmem>>, %arg3: memref<128x128xbf16, #tpu.memory_space<vmem>>, %arg4: memref<1x128xf32, #tpu.memory_space<vmem>>, %arg5: memref<128x128xbf16, #tpu.memory_space<vmem>>, %arg6: memref<1x128xf32, #tpu.memory_space<vmem>>, %arg7: memref<128x128xbf16, #tpu.memory_space<vmem>>) attributes {dimension_semantics = [#tpu.dimension_semantics<parallel>], iteration_bounds = array<i64: 2>, scalar_prefetch = 1 : i64, scratch_operands = 0 : i64, tpu.core_type = #tpu.core_type<tc>, window_params = [{transform_indices = @transform_0, window_bounds = array<i64: 128, 128>}, {pipeline_mode = #tpu.pipeline_mode<synchronous>, transform_indices = @transform_1, window_bounds = array<i64: 128, 128>}, {pipeline_mode = #tpu.pipeline_mode<synchronous>, transform_indices = @transform_2, window_bounds = array<i64: 1, 128>}, {pipeline_mode = #tpu.pipeline_mode<synchronous>, transform_indices = @transform_3, window_bounds = array<i64: 128, 128>}, {pipeline_mode = #tpu.pipeline_mode<synchronous>, transform_indices = @transform_4, window_bounds = array<i64: 1, 128>}, {transform_indices = @transform_5, window_bounds = array<i64: 128, 128>}]} {
    %c0 = arith.constant 0 : index
    %0 = memref.load %arg1[%c0] : memref<1xf32, #tpu.memory_space<smem>>
    %c0_0 = arith.constant 0 : index
    %c0_1 = arith.constant 0 : index
    %1 = vector.load %arg4[%c0_0, %c0_1] : memref<1x128xf32, #tpu.memory_space<vmem>>, vector<1x128xf32>
    %2 = vector.broadcast %0 : f32 to vector<1x128xf32>
    %3 = arith.addf %1, %2 : vector<1x128xf32>
    %c0_2 = arith.constant 0 : index
    %c0_3 = arith.constant 0 : index
    %4 = vector.load %arg2[%c0_2, %c0_3] : memref<128x128xbf16, #tpu.memory_space<vmem>>, vector<128x128xbf16>
    %c0_4 = arith.constant 0 : index
    %c0_5 = arith.constant 0 : index
    %5 = vector.load %arg3[%c0_4, %c0_5] : memref<128x128xbf16, #tpu.memory_space<vmem>>, vector<128x128xbf16>
    %c0_6 = arith.constant 0 : index
    %c0_7 = arith.constant 0 : index
    %6 = vector.load %arg5[%c0_6, %c0_7] : memref<128x128xbf16, #tpu.memory_space<vmem>>, vector<128x128xbf16>
    %c0_8 = arith.constant 0 : index
    %c0_9 = arith.constant 0 : index
    %7 = vector.load %arg6[%c0_8, %c0_9] : memref<1x128xf32, #tpu.memory_space<vmem>>, vector<1x128xf32>
    %cst = arith.constant dense<0.000000e+00> : vector<128x128xf32>
    %8 = tpu.matmul %4, %5, %cst {dimension_numbers = #tpu.dot_dimension_numbers<[1], [0], [0], [1], [0, 0, 1, 1], [], []>} : vector<128x128xbf16>, vector<128x128xbf16>, vector<128x128xf32> -> vector<128x128xf32>
    %9 = vector.broadcast %3 : vector<1x128xf32> to vector<128x128xf32>
    %10 = arith.addf %8, %9 : vector<128x128xf32>
    %11 = math.tanh %10 : vector<128x128xf32>
    %12 = arith.truncf %11 : vector<128x128xf32> to vector<128x128xbf16>
    %cst_10 = arith.constant dense<0.000000e+00> : vector<128x128xf32>
    %13 = tpu.matmul %12, %6, %cst_10 {dimension_numbers = #tpu.dot_dimension_numbers<[1], [0], [0], [1], [0, 0, 1, 1], [], []>} : vector<128x128xbf16>, vector<128x128xbf16>, vector<128x128xf32> -> vector<128x128xf32>
    %14 = vector.broadcast %7 : vector<1x128xf32> to vector<128x128xf32>
    %15 = arith.addf %13, %14 : vector<128x128xf32>
    %16 = arith.truncf %15 : vector<128x128xf32> to vector<128x128xbf16>
    %c0_11 = arith.constant 0 : index
    %c0_12 = arith.constant 0 : index
    %17 = vector.load %arg7[%c0_11, %c0_12] : memref<128x128xbf16, #tpu.memory_space<vmem>>, vector<128x128xbf16>
    tpu.vector_store %arg7[%c0_11, %c0_12], %16 {strides = array<i32>} : memref<128x128xbf16, #tpu.memory_space<vmem>>, vector<128x128xbf16>,
    return
  }
  func.func @transform_0(%arg0: i32, %arg1: memref<1xf32, #tpu.memory_space<smem>>) -> (i32, i32) {
    %c0_i32 = arith.constant 0 : i32
    %c0_i32_0 = arith.constant 0 : i32
    return %arg0, %c0_i32 : i32, i32
  }
  func.func @transform_1(%arg0: i32, %arg1: memref<1xf32, #tpu.memory_space<smem>>) -> (i32, i32) {
    %c0_i32 = arith.constant 0 : i32
    %c0_i32_0 = arith.constant 0 : i32
    %c0_i32_1 = arith.constant 0 : i32
    return %c0_i32, %c0_i32_0 : i32, i32
  }
  func.func @transform_2(%arg0: i32, %arg1: memref<1xf32, #tpu.memory_space<smem>>) -> (i32, i32) {
    %c0_i32 = arith.constant 0 : i32
    %c0_i32_0 = arith.constant 0 : i32
    %c0_i32_1 = arith.constant 0 : i32
    return %c0_i32, %c0_i32_0 : i32, i32
  }
  func.func @transform_3(%arg0: i32, %arg1: memref<1xf32, #tpu.memory_space<smem>>) -> (i32, i32) {
    %c0_i32 = arith.constant 0 : i32
    %c0_i32_0 = arith.constant 0 : i32
    %c0_i32_1 = arith.constant 0 : i32
    return %c0_i32, %c0_i32_0 : i32, i32
  }
  func.func @transform_4(%arg0: i32, %arg1: memref<1xf32, #tpu.memory_space<smem>>) -> (i32, i32) {
    %c0_i32 = arith.constant 0 : i32
    %c0_i32_0 = arith.constant 0 : i32
    %c0_i32_1 = arith.constant 0 : i32
    return %c0_i32, %c0_i32_0 : i32, i32
  }
  func.func @transform_5(%arg0: i32, %arg1: memref<1xf32, #tpu.memory_space<smem>>) -> (i32, i32) {
    %c0_i32 = arith.constant 0 : i32
    %c0_i32_0 = arith.constant 0 : i32
    return %arg0, %c0_i32 : i32, i32
  }
}

</mosaic_0001>

<llo_original>
// kernel: _node_df_call.1
$region0: #{_node_df_call.1}
  #allocation0 [shape = 'u32[]', space=smem, size = 0x4, offset = 0x4, fixed_abs, tag = 'smem constant byte address 0x4 - core index']
  #allocation1 [shape = 'u32[144,128]{1,0:T(1,128)}', space=vmem, size = 0x12000, scoped, tag = 'internal scratch']
  #allocation2 [shape = 's32[1]{0}', space=sflag, size = 0x4, scoped, tag = 'scoped memory for _node_df_call.1']
  #allocation3 [shape = 'f32[1]{0:T(128)S(6)}', space=smem, size = 0x200, scoped, tag = 'prefetched SMEM operand 0']
  %s0 = inlined_call_operand.<no memory space> [shape: f32[1], index: 0, kind: input, shape index: {}]
  %s1 = inlined_call_operand.vmem [shape: bf16[256,128], index: 1, kind: input, shape index: {}]
  %s2 = inlined_call_operand.vmem [shape: bf16[128,128], index: 2, kind: input, shape index: {}]
  %s3 = inlined_call_operand.vmem [shape: f32[1,128], index: 3, kind: input, shape index: {}]
  %s4 = inlined_call_operand.vmem [shape: bf16[128,128], index: 4, kind: input, shape index: {}]
  %s5 = inlined_call_operand.vmem [shape: f32[1,128], index: 5, kind: input, shape index: {}]
  %s6 = inlined_call_operand.hbm [shape: bf16[256,128], index: 6, kind: output, shape index: {}]
  %s7 = sld [smem:[#allocation0]]
  $region53: #{_node_df_call.1} parent=0
    _
  %s9 = ssub.s32 1, %s7
  %s10 = scalar_select 0, %s9, %s7
  %11 = sst [smem:[#allocation3]] %s0
  $region1: #{_node_df_call.1} parent=0
    #allocation4 [shape = 'u8[65536]{0}', space=vmem, size = 0x10000, scoped, tag = 'output window, operand 0']
    #allocation5 [shape = 's32[2]{0}', space=sflag, size = 0x8, scoped, tag = 'scoped memory for _node_df_call.1']
    %12 = vsyncpa [#allocation5], 0
    %s13 = scalar_lea.sflag [#allocation5], 1
    %14 = vsyncpa %s13, 0
    loop: start=0, step=1, limit=4
    $region2: #{_node_df_call.1} parent=1 // loop_pre_header
      _
    $region3: #{_node_df_call.1} parent=1 // loop_header
      %s16 = sphi 0, %s20
      %p17 = scmp.ge.s32.totalorder %s16, 4
      %s26 = sphi 0, %s28
      %s29 = sphi 0, %s26
      %s30 = sphi 0, %s29
      %s46 = sphi 0, %s30
      %s50 = sphi 0, %s50
      %s52 = sphi 0, %s50
      %s53 = sphi 0, %s52
      %s67 = sphi 0, %s53
      %s71 = sphi 0, %s71
      %s73 = sphi 0, %s71
      %s74 = sphi 0, %s73
      %s88 = sphi 0, %s74
      %s92 = sphi 0, %s92
      %s94 = sphi 0, %s92
      %s95 = sphi 0, %s94
      %s109 = sphi 0, %s95
      %s113 = sphi 0, %s113
      %s115 = sphi 0, %s113
      %s116 = sphi 0, %s115
      %s130 = sphi 0, %s116
      %s136 = sphi 0, %s138
      %s139 = sphi 0, %s136
      %s140 = sphi 0, %s139
      %s156 = sphi 0, %s140
    $region4: #{_node_df_call.1} parent=1 // loop_header_branch
      %19 = sbr.rel (%p17) target = $region8
    $region5: #{_node_df_call.1} parent=1 // loop_body
      %s21 = ssub.s32 %s16, 1
      %s22 = ssub.s32 %s16, 2
      %s23 = sadd.s32 %s16, 1
      %s24 = ssub.s32 %s16, %s23
      %p25 = scmp.eq.s32.totalorder %s24, 0
      %s27 = sadd.s32 %s26, 1
      %s28 = scalar_select %p25, %s26, %s27
      %p31 = pneg %p25
      %p32 = scmp.eq.s32.totalorder %s16, 1
      %p33 = por %p31, %p32
      %p34 = scmp.ne.s32.totalorder %s26, %s29
      %p35 = scmp.eq.s32.totalorder %s16, 0
      %p36 = por %p34, %p35
      %p37 = scmp.ne.s32.totalorder %s26, %s29
      %p38 = scmp.eq.s32.totalorder %s21, 1
      %p39 = por %p37, %p38
      %p40 = scmp.ne.s32.totalorder %s29, %s30
      %p41 = scmp.eq.s32.totalorder %s21, 0
      %p42 = por %p40, %p41
      %p43 = scmp.ne.s32.totalorder %s29, %s30
      %p44 = scmp.eq.s32.totalorder %s22, 1
      %p45 = por %p43, %p44
      %p47 = scmp.ne.s32.totalorder %s30, %s46
      %p48 = scmp.eq.s32.totalorder %s22, 0
      %p49 = por %p47, %p48
      %s51 = sadd.s32 %s50, 1
      %p54 = scmp.eq.s32.totalorder %s16, 1
      %p55 = scmp.ne.s32.totalorder %s50, %s52
      %p56 = scmp.eq.s32.totalorder %s16, 0
      %p57 = por %p55, %p56
      %p58 = scmp.ne.s32.totalorder %s50, %s52
      %p59 = scmp.eq.s32.totalorder %s21, 1
      %p60 = por %p58, %p59
      %p61 = scmp.ne.s32.totalorder %s52, %s53
      %p62 = scmp.eq.s32.totalorder %s21, 0
      %p63 = por %p61, %p62
      %p64 = scmp.ne.s32.totalorder %s52, %s53
      %p65 = scmp.eq.s32.totalorder %s22, 1
      %p66 = por %p64, %p65
      %p68 = scmp.ne.s32.totalorder %s53, %s67
      %p69 = scmp.eq.s32.totalorder %s22, 0
      %p70 = por %p68, %p69
      %s72 = sadd.s32 %s71, 1
      %p75 = scmp.eq.s32.totalorder %s16, 1
      %p76 = scmp.ne.s32.totalorder %s71, %s73
      %p77 = scmp.eq.s32.totalorder %s16, 0
      %p78 = por %p76, %p77
      %p79 = scmp.ne.s32.totalorder %s71, %s73
      %p80 = scmp.eq.s32.totalorder %s21, 1
      %p81 = por %p79, %p80
      %p82 = scmp.ne.s32.totalorder %s73, %s74
      %p83 = scmp.eq.s32.totalorder %s21, 0
      %p84 = por %p82, %p83
      %p85 = scmp.ne.s32.totalorder %s73, %s74
      %p86 = scmp.eq.s32.totalorder %s22, 1
      %p87 = por %p85, %p86
      %p89 = scmp.ne.s32.totalorder %s74, %s88
      %p90 = scmp.eq.s32.totalorder %s22, 0
      %p91 = por %p89, %p90
      %s93 = sadd.s32 %s92, 1
      %p96 = scmp.eq.s32.totalorder %s16, 1
      %p97 = scmp.ne.s32.totalorder %s92, %s94
      %p98 = scmp.eq.s32.totalorder %s16, 0
      %p99 = por %p97, %p98
      %p100 = scmp.ne.s32.totalorder %s92, %s94
      %p101 = scmp.eq.s32.totalorder %s21, 1
      %p102 = por %p100, %p101
      %p103 = scmp.ne.s32.totalorder %s94, %s95
      %p104 = scmp.eq.s32.totalorder %s21, 0
      %p105 = por %p103, %p104
      %p106 = scmp.ne.s32.totalorder %s94, %s95
      %p107 = scmp.eq.s32.totalorder %s22, 1
      %p108 = por %p106, %p107
      %p110 = scmp.ne.s32.totalorder %s95, %s109
      %p111 = scmp.eq.s32.totalorder %s22, 0
      %p112 = por %p110, %p111
      %s114 = sadd.s32 %s113, 1
      %p117 = scmp.eq.s32.totalorder %s16, 1
      %p118 = scmp.ne.s32.totalorder %s113, %s115
      %p119 = scmp.eq.s32.totalorder %s16, 0
      %p120 = por %p118, %p119
      %p121 = scmp.ne.s32.totalorder %s113, %s115
      %p122 = scmp.eq.s32.totalorder %s21, 1
      %p123 = por %p121, %p122
      %p124 = scmp.ne.s32.totalorder %s115, %s116
      %p125 = scmp.eq.s32.totalorder %s21, 0
      %p126 = por %p124, %p125
      %p127 = scmp.ne.s32.totalorder %s115, %s116
      %p128 = scmp.eq.s32.totalorder %s22, 1
      %p129 = por %p127, %p128
      %p131 = scmp.ne.s32.totalorder %s116, %s130
      %p132 = scmp.eq.s32.totalorder %s22, 0
      %p133 = por %p131, %p132
      %s134 = ssub.s32 %s16, %s23
      %p135 = scmp.eq.s32.totalorder %s134, 0
      %s137 = sadd.s32 %s136, 1
      %s138 = scalar_select %p135, %s136, %s137
      %p141 = pneg %p135
      %p142 = scmp.eq.s32.totalorder %s16, 1
      %p143 = por %p141, %p142
      %p144 = scmp.ne.s32.totalorder %s136, %s139
      %p145 = scmp.eq.s32.totalorder %s16, 0
      %p146 = por %p144, %p145
      %p147 = scmp.ne.s32.totalorder %s136, %s139
      %p148 = scmp.eq.s32.totalorder %s21, 1
      %p149 = por %p147, %p148
      %p150 = scmp.ne.s32.totalorder %s139, %s140
      %p151 = scmp.eq.s32.totalorder %s21, 0
      %p152 = por %p150, %p151
      %p153 = scmp.ne.s32.totalorder %s139, %s140
      %p154 = scmp.eq.s32.totalorder %s22, 1
      %p155 = por %p153, %p154
      %p157 = scmp.ne.s32.totalorder %s140, %s156
      %p158 = scmp.eq.s32.totalorder %s22, 0
      %p159 = por %p157, %p158
      %p160 = scmp.le.s32.totalorder 1, %s16
      %p161 = scmp.lt.s32.totalorder %s16, 3
      %p162 = pnand %p160, %p161
      %p163 = pneg %p162
      // Predicated region
      $region9: #{_node_df_call.1} parent=5 // pred_check
        _
      $region10: #{_node_df_call.1} parent=5 // pred_check_branch
        %165 = sbr.rel (%p162) target = $region12
      $region11: #{_node_df_call.1} parent=5 // pred_region
        %s166 = ssub.s32 %s16, 1
        // Predicated region
        $region13: #{_node_df_call.1} parent=11 // pred_check
          %p167 = pneg %p63
        $region14: #{_node_df_call.1} parent=11 // pred_check_branch
          %169 = sbr.rel (%p167) target = $region16
        $region15: #{_node_df_call.1} parent=11 // pred_region
          _
        $region16: #{_node_df_call.1} parent=11 // pred_fallthru
          _
        // Predicated region
        $region17: #{_node_df_call.1} parent=11 // pred_check
          %p170 = pneg %p84
        $region18: #{_node_df_call.1} parent=11 // pred_check_branch
          %172 = sbr.rel (%p170) target = $region20
        $region19: #{_node_df_call.1} parent=11 // pred_region
          _
        $region20: #{_node_df_call.1} parent=11 // pred_fallthru
          _
        // Predicated region
        $region21: #{_node_df_call.1} parent=11 // pred_check
          %p173 = pneg %p105
        $region22: #{_node_df_call.1} parent=11 // pred_check_branch
          %175 = sbr.rel (%p173) target = $region24
        $region23: #{_node_df_call.1} parent=11 // pred_region
          _
        $region24: #{_node_df_call.1} parent=11 // pred_fallthru
          _
        // Predicated region
        $region25: #{_node_df_call.1} parent=11 // pred_check
          %p176 = pneg %p126
        $region26: #{_node_df_call.1} parent=11 // pred_check_branch
          %178 = sbr.rel (%p176) target = $region28
        $region27: #{_node_df_call.1} parent=11 // pred_region
          _
        $region28: #{_node_df_call.1} parent=11 // pred_fallthru
          _
      $region12: #{_node_df_call.1} parent=5 // pred_fallthru
        _
      %p179 = scmp.lt.s32.totalorder %s16, 2
      // Predicated region
      $region29: #{_node_df_call.1} parent=5 // pred_check
        %p180 = pneg %p179
      $region30: #{_node_df_call.1} parent=5 // pred_check_branch
        %182 = sbr.rel (%p180) target = $region32
      $region31: #{_node_df_call.1} parent=5 // pred_region
        // Predicated region
        $region33: #{_node_df_call.1} parent=31 // pred_check
          %p183 = pneg %p36
        $region34: #{_node_df_call.1} parent=31 // pred_check_branch
          %185 = sbr.rel (%p183) target = $region36
        $region35: #{_node_df_call.1} parent=31 // pred_region
          %s186 = smul.u32 16, %s16
          %p187 = scmp.lt.s32.totalorder %s186, 31
          %s188 = scalar_select %p187, %s186, 31
          %s189 = smul.addr %s188, 4
          %s190 = scalar_lea.vmem %s1, %s189
          %s191 = smul.u32 16, %s16
        $region36: #{_node_df_call.1} parent=31 // pred_fallthru
          _
      $region32: #{_node_df_call.1} parent=5 // pred_fallthru
        _
      %p192 = scmp.le.s32.totalorder 1, %s16
      %p193 = scmp.lt.s32.totalorder %s16, 3
      %p194 = pnand %p192, %p193
      %p195 = pneg %p194
      // Predicated region
      $region37: #{_node_df_call.1} parent=5 // pred_check
        _
      $region38: #{_node_df_call.1} parent=5 // pred_check_branch
        %197 = sbr.rel (%p194) target = $region40
      $region39: #{_node_df_call.1} parent=5 // pred_region
        %s198 = ssub.s32 %s16, 1
        %s199 = smul.u32 16, %s21
        %p200 = scmp.lt.s32.totalorder %s199, 31
        %s201 = scalar_select %p200, %s199, 31
        %s202 = smul.addr %s201, 4
        %s203 = scalar_lea.vmem %s1, %s202
        %p204 = pneg %p42
        %p205 = pneg %p39
        %p206 = pneg %p63
        %p207 = pneg %p60
        %p208 = pneg %p84
        %p209 = pneg %p81
        %p210 = pneg %p105
        %p211 = pneg %p102
        %p212 = pneg %p126
        %p213 = pneg %p123
        %p214 = pneg %p152
        %p215 = pneg %p149
        %s216 = sand.u32 %s139, 1
        %s217 = scalar_lea.sflag [#allocation5], %s216
        %s218 = sand.u32 %s139, 1
        %s219 = smul.addr %s218, 64
        %s220 = scalar_lea.vmem [#allocation4], %s219
        %s221 = smul.u32 16, %s21
        %p222 = scmp.lt.s32.totalorder %s221, 31
        %s223 = scalar_select %p222, %s221, 31
        %s224 = smul.addr %s223, 4
        %s225 = scalar_lea.vmem %s1, %s224
        %s226 = smul.u32 16, %s21
        %s227 = smul.u32 16, %s21
        %s229 = sld [smem:[#allocation3]]
        %v230 = vld [vmem:[%s3] sm:$0x1]
        %v231 = vstv %s229
        %v232 = vadd.f32 %v230, %v231
        %v233 = vld [vmem:[%s225] sm:$0xf]
        %v234 = vld [vmem:[%s225 + $0x4] sm:$0xf]
        %v235 = vld [vmem:[%s225 + $0x8] sm:$0xf]
        %v236 = vld [vmem:[%s225 + $0xc] sm:$0xf]
        %v237 = vld [vmem:[%s225 + $0x10] sm:$0xf]
        %v238 = vld [vmem:[%s225 + $0x14] sm:$0xf]
        %v239 = vld [vmem:[%s225 + $0x18] sm:$0xf]
        %v240 = vld [vmem:[%s225 + $0x1c] sm:$0xf]
        %v241 = vld [vmem:[%s225 + $0x20] sm:$0xf]
        %v242 = vld [vmem:[%s225 + $0x24] sm:$0xf]
        %v243 = vld [vmem:[%s225 + $0x28] sm:$0xf]
        %v244 = vld [vmem:[%s225 + $0x2c] sm:$0xf]
        %v245 = vld [vmem:[%s225 + $0x30] sm:$0xf]
        %v246 = vld [vmem:[%s225 + $0x34] sm:$0xf]
        %v247 = vld [vmem:[%s225 + $0x38] sm:$0xf]
        %v248 = vld [vmem:[%s225 + $0x3c] sm:$0xf]
        %v249 = vld [vmem:[%s2] sm:$0xf]
        %v250 = vld [vmem:[%s2 + $0x4] sm:$0xf]
        %v251 = vld [vmem:[%s2 + $0x8] sm:$0xf]
        %v252 = vld [vmem:[%s2 + $0xc] sm:$0xf]
        %v253 = vld [vmem:[%s2 + $0x10] sm:$0xf]
        %v254 = vld [vmem:[%s2 + $0x14] sm:$0xf]
        %v255 = vld [vmem:[%s2 + $0x18] sm:$0xf]
        %v256 = vld [vmem:[%s2 + $0x1c] sm:$0xf]
        %v257 = vld [vmem:[%s2 + $0x20] sm:$0xf]
        %v258 = vld [vmem:[%s2 + $0x24] sm:$0xf]
        %v259 = vld [vmem:[%s2 + $0x28] sm:$0xf]
        %v260 = vld [vmem:[%s2 + $0x2c] sm:$0xf]
        %v261 = vld [vmem:[%s2 + $0x30] sm:$0xf]
        %v262 = vld [vmem:[%s2 + $0x34] sm:$0xf]
        %v263 = vld [vmem:[%s2 + $0x38] sm:$0xf]
        %v264 = vld [vmem:[%s2 + $0x3c] sm:$0xf]
        %v265 = vld [vmem:[%s4] sm:$0xf]
        %v266 = vld [vmem:[%s4 + $0x4] sm:$0xf]
        %v267 = vld [vmem:[%s4 + $0x8] sm:$0xf]
        %v268 = vld [vmem:[%s4 + $0xc] sm:$0xf]
        %v269 = vld [vmem:[%s4 + $0x10] sm:$0xf]
        %v270 = vld [vmem:[%s4 + $0x14] sm:$0xf]
        %v271 = vld [vmem:[%s4 + $0x18] sm:$0xf]
        %v272 = vld [vmem:[%s4 + $0x1c] sm:$0xf]
        %v273 = vld [vmem:[%s4 + $0x20] sm:$0xf]
        %v274 = vld [vmem:[%s4 + $0x24] sm:$0xf]
        %v275 = vld [vmem:[%s4 + $0x28] sm:$0xf]
        %v276 = vld [vmem:[%s4 + $0x2c] sm:$0xf]
        %v277 = vld [vmem:[%s4 + $0x30] sm:$0xf]
        %v278 = vld [vmem:[%s4 + $0x34] sm:$0xf]
        %v279 = vld [vmem:[%s4 + $0x38] sm:$0xf]
        %v280 = vld [vmem:[%s4 + $0x3c] sm:$0xf]
        %v281 = vld [vmem:[%s5] sm:$0x1]
        %v283 = vlaneseq
        %v284 = vshrl.u32 %v283, 7
        %v285 = vsub.s32 0, %v284
        %v286 = vrot.slane %v232, %v285
        %v304 = vunpack.c.l.b16 %v233
        %v305 = vunpack.c.l.b16 %v234
        %v306 = vunpack.c.l.b16 %v235
        %v307 = vunpack.c.l.b16 %v236
        %v308 = vunpack.c.l.b16 %v237
        %v309 = vunpack.c.l.b16 %v238
        %v310 = vunpack.c.l.b16 %v239
        %v311 = vunpack.c.l.b16 %v240
        %v312 = vunpack.c.l.b16 %v241
        %v313 = vunpack.c.l.b16 %v242
        %v314 = vunpack.c.l.b16 %v243
        %v315 = vunpack.c.l.b16 %v244
        %v316 = vunpack.c.l.b16 %v245
        %v317 = vunpack.c.l.b16 %v246
        %v318 = vunpack.c.l.b16 %v247
        %v319 = vunpack.c.l.b16 %v248
        %v320 = vpack.c.b16 %v305, %v304
        %v321 = vpack.c.b16 %v307, %v306
        %v322 = vpack.c.b16 %v309, %v308
        %v323 = vpack.c.b16 %v311, %v310
        %v324 = vpack.c.b16 %v313, %v312
        %v325 = vpack.c.b16 %v315, %v314
        %v326 = vpack.c.b16 %v317, %v316
        %v327 = vpack.c.b16 %v319, %v318
        %v352 = vunpack.c.l.b16 %v249
        %v353 = vunpack.c.l.b16 %v250
        %v354 = vunpack.c.l.b16 %v251
        %v355 = vunpack.c.l.b16 %v252
        %v356 = vunpack.c.l.b16 %v253
        %v357 = vunpack.c.l.b16 %v254
        %v358 = vunpack.c.l.b16 %v255
        %v359 = vunpack.c.l.b16 %v256
        %v360 = vunpack.c.l.b16 %v257
        %v361 = vunpack.c.l.b16 %v258
        %v362 = vunpack.c.l.b16 %v259
        %v363 = vunpack.c.l.b16 %v260
        %v364 = vunpack.c.l.b16 %v261
        %v365 = vunpack.c.l.b16 %v262
        %v366 = vunpack.c.l.b16 %v263
        %v367 = vunpack.c.l.b16 %v264
        %v368 = vpack.c.b16 %v353, %v352
        %v369 = vpack.c.b16 %v355, %v354
        %v370 = vpack.c.b16 %v357, %v356
        %v371 = vpack.c.b16 %v359, %v358
        %v372 = vpack.c.b16 %v361, %v360
        %v373 = vpack.c.b16 %v363, %v362
        %v374 = vpack.c.b16 %v365, %v364
        %v375 = vpack.c.b16 %v367, %v366
        %384 = vmatprep.subr.bf16.mxu0 0
        %385 = vmatpush1.bf16.msra.mxu0 %v368
        %386 = vmatprep.subr.bf16.mxu0 0
        %387 = vmatpush1.bf16.msra.mxu0 %v369
        %388 = vmatprep.subr.bf16.mxu0 0
        %389 = vmatpush1.bf16.msra.mxu0 %v370
        %390 = vmatprep.subr.bf16.mxu0 0
        %391 = vmatpush1.bf16.msra.mxu0 %v371
        %392 = vmatprep.subr.bf16.mxu0 0
        %393 = vmatpush1.bf16.msra.mxu0 %v372
        %394 = vmatprep.subr.bf16.mxu0 0
        %395 = vmatpush1.bf16.msra.mxu0 %v373
        %396 = vmatprep.subr.bf16.mxu0 0
        %397 = vmatpush1.bf16.msra.mxu0 %v374
        %398 = vmatprep.subr.bf16.mxu0 0
        %399 = vmatpush1.bf16.msra.mxu0 %v375
        %400 = vmatprep.subr.bf16.mxu0 0
        %401 = vmatpush1.bf16.msra.mxu0 0
        %402 = vmatprep.subr.bf16.mxu0 0
        %403 = vmatpush1.bf16.msra.mxu0 0
        %404 = vmatprep.subr.bf16.mxu0 0
        %405 = vmatpush1.bf16.msra.mxu0 0
        %406 = vmatprep.subr.bf16.mxu0 0
        %407 = vmatpush1.bf16.msra.mxu0 0
        %408 = vmatprep.subr.bf16.mxu0 0
        %409 = vmatpush1.bf16.msra.mxu0 0
        %410 = vmatprep.subr.bf16.mxu0 0
        %411 = vmatpush1.bf16.msra.mxu0 0
        %412 = vmatprep.subr.bf16.mxu0 0
        %413 = vmatpush1.bf16.msra.mxu0 0
        %414 = vmatprep.subr.bf16.mxu0 0
        %415 = vmatpush1.bf16.msra.mxu0 0
        %416 = vmatprep.mubr.bf16.mxu0 0
        %417 = vmatmul.mubr.bf16.gmra.mrb[0].mxu0 %v320
        %v418 = vpop.f32.mrb[0].mxu0
        %v419 = vadd.f32 %v286, %v418
        %v420 = vpop.f32.mrb[0].mxu0
        %v421 = vpop.f32.mrb[0].mxu0
        %v422 = vadd.f32 %v286, %v421
        %v423 = vpop.f32.mrb[0].mxu0
        %424 = vmatprep.mubr.bf16.mxu0 0
        %425 = vmatmul.mubr.bf16.gmra.mrb[0].mxu0 %v321
        %v426 = vpop.f32.mrb[0].mxu0
        %v427 = vadd.f32 %v286, %v426
        %v428 = vpop.f32.mrb[0].mxu0
        %v429 = vpop.f32.mrb[0].mxu0
        %v430 = vadd.f32 %v286, %v429
        %v431 = vpop.f32.mrb[0].mxu0
        %432 = vmatprep.mubr.bf16.mxu0 0
        %433 = vmatmul.mubr.bf16.gmra.mrb[0].mxu0 %v322
        %v434 = vpop.f32.mrb[0].mxu0
        %v435 = vadd.f32 %v286, %v434
        %v436 = vpop.f32.mrb[0].mxu0
        %v437 = vpop.f32.mrb[0].mxu0
        %v438 = vadd.f32 %v286, %v437
        %v439 = vpop.f32.mrb[0].mxu0
        %440 = vmatprep.mubr.bf16.mxu0 0
        %441 = vmatmul.mubr.bf16.gmra.mrb[0].mxu0 %v323
        %v442 = vpop.f32.mrb[0].mxu0
        %v443 = vadd.f32 %v286, %v442
        %v444 = vpop.f32.mrb[0].mxu0
        %v445 = vpop.f32.mrb[0].mxu0
        %v446 = vadd.f32 %v286, %v445
        %v447 = vpop.f32.mrb[0].mxu0
        %448 = vmatprep.mubr.bf16.mxu0 0
        %449 = vmatmul.mubr.bf16.gmra.mrb[0].mxu0 %v324
        %v450 = vpop.f32.mrb[0].mxu0
        %v451 = vadd.f32 %v286, %v450
        %v452 = vpop.f32.mrb[0].mxu0
        %v453 = vpop.f32.mrb[0].mxu0
        %v454 = vadd.f32 %v286, %v453
        %v455 = vpop.f32.mrb[0].mxu0
        %456 = vmatprep.mubr.bf16.mxu0 0
        %457 = vmatmul.mubr.bf16.gmra.mrb[0].mxu0 %v325
        %v458 = vpop.f32.mrb[0].mxu0
        %v459 = vadd.f32 %v286, %v458
        %v460 = vpop.f32.mrb[0].mxu0
        %v461 = vpop.f32.mrb[0].mxu0
        %v462 = vadd.f32 %v286, %v461
        %v463 = vpop.f32.mrb[0].mxu0
        %464 = vmatprep.mubr.bf16.mxu0 0
        %465 = vmatmul.mubr.bf16.gmra.mrb[0].mxu0 %v326
        %v466 = vpop.f32.mrb[0].mxu0
        %v467 = vadd.f32 %v286, %v466
        %v468 = vpop.f32.mrb[0].mxu0
        %v469 = vpop.f32.mrb[0].mxu0
        %v470 = vadd.f32 %v286, %v469
        %v471 = vpop.f32.mrb[0].mxu0
        %472 = vmatprep.mubr.bf16.mxu0 0
        %473 = vmatmul.mubr.bf16.gmra.mrb[0].mxu0 %v327
        %v474 = vpop.f32.mrb[0].mxu0
        %v475 = vadd.f32 %v286, %v474
        %v476 = vpop.f32.mrb[0].mxu0
        %v477 = vpop.f32.mrb[0].mxu0
        %v478 = vadd.f32 %v286, %v477
        %v479 = vpop.f32.mrb[0].mxu0
        %480 = vdwg.mxu0
        %v481 = vtanh.pop %v419
        %v482 = vtanh.pop %v422
        %v483 = vtanh.pop %v427
        %v484 = vtanh.pop %v430
        %v485 = vtanh.pop %v435
        %v486 = vtanh.pop %v438
        %v487 = vtanh.pop %v443
        %v488 = vtanh.pop %v446
        %v489 = vtanh.pop %v451
        %v490 = vtanh.pop %v454
        %v491 = vtanh.pop %v459
        %v492 = vtanh.pop %v462
        %v493 = vtanh.pop %v467
        %v494 = vtanh.pop %v470
        %v495 = vtanh.pop %v475
        %v496 = vtanh.pop %v478
        %v497 = vpack.c.bf16 %v482, %v481
        %v498 = vpack.c.bf16 %v484, %v483
        %v499 = vpack.c.bf16 %v486, %v485
        %v500 = vpack.c.bf16 %v488, %v487
        %v501 = vpack.c.bf16 %v490, %v489
        %v502 = vpack.c.bf16 %v492, %v491
        %v503 = vpack.c.bf16 %v494, %v493
        %v504 = vpack.c.bf16 %v496, %v495
        %v506 = vlaneseq
        %v507 = vshrl.u32 %v506, 7
        %v508 = vsub.s32 0, %v507
        %v509 = vrot.slane %v281, %v508
        %v527 = vunpack.c.l.b16 %v265
        %v528 = vunpack.c.l.b16 %v266
        %v529 = vunpack.c.l.b16 %v267
        %v530 = vunpack.c.l.b16 %v268
        %v531 = vunpack.c.l.b16 %v269
        %v532 = vunpack.c.l.b16 %v270
        %v533 = vunpack.c.l.b16 %v271
        %v534 = vunpack.c.l.b16 %v272
        %v535 = vunpack.c.l.b16 %v273
        %v536 = vunpack.c.l.b16 %v274
        %v537 = vunpack.c.l.b16 %v275
        %v538 = vunpack.c.l.b16 %v276
        %v539 = vunpack.c.l.b16 %v277
        %v540 = vunpack.c.l.b16 %v278
        %v541 = vunpack.c.l.b16 %v279
        %v542 = vunpack.c.l.b16 %v280
        %v543 = vpack.c.b16 %v528, %v527
        %v544 = vpack.c.b16 %v530, %v529
        %v545 = vpack.c.b16 %v532, %v531
        %v546 = vpack.c.b16 %v534, %v533
        %v547 = vpack.c.b16 %v536, %v535
        %v548 = vpack.c.b16 %v538, %v537
        %v549 = vpack.c.b16 %v540, %v539
        %v550 = vpack.c.b16 %v542, %v541
        %559 = vmatprep.subr.bf16.mxu0 0
        %560 = vmatpush1.bf16.msra.mxu0 %v543
        %561 = vmatprep.subr.bf16.mxu0 0
        %562 = vmatpush1.bf16.msra.mxu0 %v544
        %563 = vmatprep.subr.bf16.mxu0 0
        %564 = vmatpush1.bf16.msra.mxu0 %v545
        %565 = vmatprep.subr.bf16.mxu0 0
        %566 = vmatpush1.bf16.msra.mxu0 %v546
        %567 = vmatprep.subr.bf16.mxu0 0
        %568 = vmatpush1.bf16.msra.mxu0 %v547
        %569 = vmatprep.subr.bf16.mxu0 0
        %570 = vmatpush1.bf16.msra.mxu0 %v548
        %571 = vmatprep.subr.bf16.mxu0 0
        %572 = vmatpush1.bf16.msra.mxu0 %v549
        %573 = vmatprep.subr.bf16.mxu0 0
        %574 = vmatpush1.bf16.msra.mxu0 %v550
        %575 = vmatprep.subr.bf16.mxu0 0
        %576 = vmatpush1.bf16.msra.mxu0 0
        %577 = vmatprep.subr.bf16.mxu0 0
        %578 = vmatpush1.bf16.msra.mxu0 0
        %579 = vmatprep.subr.bf16.mxu0 0
        %580 = vmatpush1.bf16.msra.mxu0 0
        %581 = vmatprep.subr.bf16.mxu0 0
        %582 = vmatpush1.bf16.msra.mxu0 0
        %583 = vmatprep.subr.bf16.mxu0 0
        %584 = vmatpush1.bf16.msra.mxu0 0
        %585 = vmatprep.subr.bf16.mxu0 0
        %586 = vmatpush1.bf16.msra.mxu0 0
        %587 = vmatprep.subr.bf16.mxu0 0
        %588 = vmatpush1.bf16.msra.mxu0 0
        %589 = vmatprep.subr.bf16.mxu0 0
        %590 = vmatpush1.bf16.msra.mxu0 0
        %591 = vmatprep.mubr.bf16.mxu0 0
        %592 = vmatmul.mubr.bf16.gmra.mrb[0].mxu0 %v497
        %v593 = vpop.f32.mrb[0].mxu0
        %v594 = vadd.f32 %v509, %v593
        %v595 = vpop.f32.mrb[0].mxu0
        %v596 = vpop.f32.mrb[0].mxu0
        %v597 = vadd.f32 %v509, %v596
        %v598 = vpop.f32.mrb[0].mxu0
        %599 = vmatprep.mubr.bf16.mxu0 0
        %600 = vmatmul.mubr.bf16.gmra.mrb[0].mxu0 %v498
        %v601 = vpop.f32.mrb[0].mxu0
        %v602 = vadd.f32 %v509, %v601
        %v603 = vpop.f32.mrb[0].mxu0
        %v604 = vpop.f32.mrb[0].mxu0
        %v605 = vadd.f32 %v509, %v604
        %v606 = vpop.f32.mrb[0].mxu0
        %607 = vmatprep.mubr.bf16.mxu0 0
        %608 = vmatmul.mubr.bf16.gmra.mrb[0].mxu0 %v499
        %v609 = vpop.f32.mrb[0].mxu0
        %v610 = vadd.f32 %v509, %v609
        %v611 = vpop.f32.mrb[0].mxu0
        %v612 = vpop.f32.mrb[0].mxu0
        %v613 = vadd.f32 %v509, %v612
        %v614 = vpop.f32.mrb[0].mxu0
        %615 = vmatprep.mubr.bf16.mxu0 0
        %616 = vmatmul.mubr.bf16.gmra.mrb[0].mxu0 %v500
        %v617 = vpop.f32.mrb[0].mxu0
        %v618 = vadd.f32 %v509, %v617
        %v619 = vpop.f32.mrb[0].mxu0
        %v620 = vpop.f32.mrb[0].mxu0
        %v621 = vadd.f32 %v509, %v620
        %v622 = vpop.f32.mrb[0].mxu0
        %623 = vmatprep.mubr.bf16.mxu0 0
        %624 = vmatmul.mubr.bf16.gmra.mrb[0].mxu0 %v501
        %v625 = vpop.f32.mrb[0].mxu0
        %v626 = vadd.f32 %v509, %v625
        %v627 = vpop.f32.mrb[0].mxu0
        %v628 = vpop.f32.mrb[0].mxu0
        %v629 = vadd.f32 %v509, %v628
        %v630 = vpop.f32.mrb[0].mxu0
        %631 = vmatprep.mubr.bf16.mxu0 0
        %632 = vmatmul.mubr.bf16.gmra.mrb[0].mxu0 %v502
        %v633 = vpop.f32.mrb[0].mxu0
        %v634 = vadd.f32 %v509, %v633
        %v635 = vpop.f32.mrb[0].mxu0
        %v636 = vpop.f32.mrb[0].mxu0
        %v637 = vadd.f32 %v509, %v636
        %v638 = vpop.f32.mrb[0].mxu0
        %639 = vmatprep.mubr.bf16.mxu0 0
        %640 = vmatmul.mubr.bf16.gmra.mrb[0].mxu0 %v503
        %v641 = vpop.f32.mrb[0].mxu0
        %v642 = vadd.f32 %v509, %v641
        %v643 = vpop.f32.mrb[0].mxu0
        %v644 = vpop.f32.mrb[0].mxu0
        %v645 = vadd.f32 %v509, %v644
        %v646 = vpop.f32.mrb[0].mxu0
        %647 = vmatprep.mubr.bf16.mxu0 0
        %648 = vmatmul.mubr.bf16.gmra.mrb[0].mxu0 %v504
        %v649 = vpop.f32.mrb[0].mxu0
        %v650 = vadd.f32 %v509, %v649
        %v651 = vpop.f32.mrb[0].mxu0
        %v652 = vpop.f32.mrb[0].mxu0
        %v653 = vadd.f32 %v509, %v652
        %v654 = vpop.f32.mrb[0].mxu0
        %655 = vdwg.mxu0
        %v656 = vpack.c.bf16 %v597, %v594
        %v657 = vpack.c.bf16 %v605, %v602
        %v658 = vpack.c.bf16 %v613, %v610
        %v659 = vpack.c.bf16 %v621, %v618
        %v660 = vpack.c.bf16 %v629, %v626
        %v661 = vpack.c.bf16 %v637, %v634
        %v662 = vpack.c.bf16 %v645, %v642
        %v663 = vpack.c.bf16 %v653, %v650
        %v672 = vunpack.c.l.b16 %v656
        %v673 = vunpack.c.h.b16 %v656
        %v674 = vunpack.c.l.b16 %v657
        %v675 = vunpack.c.h.b16 %v657
        %v676 = vunpack.c.l.b16 %v658
        %v677 = vunpack.c.h.b16 %v658
        %v678 = vunpack.c.l.b16 %v659
        %v679 = vunpack.c.h.b16 %v659
        %v680 = vunpack.c.l.b16 %v660
        %v681 = vunpack.c.h.b16 %v660
        %v682 = vunpack.c.l.b16 %v661
        %v683 = vunpack.c.h.b16 %v661
        %v684 = vunpack.c.l.b16 %v662
        %v685 = vunpack.c.h.b16 %v662
        %v686 = vunpack.c.l.b16 %v663
        %v687 = vunpack.c.h.b16 %v663
        %v688 = vpack.c.b16 %v672, %v672
        %v689 = vpack.c.b16 %v673, %v673
        %v690 = vpack.c.b16 %v674, %v674
        %v691 = vpack.c.b16 %v675, %v675
        %v692 = vpack.c.b16 %v676, %v676
        %v693 = vpack.c.b16 %v677, %v677
        %v694 = vpack.c.b16 %v678, %v678
        %v695 = vpack.c.b16 %v679, %v679
        %v696 = vpack.c.b16 %v680, %v680
        %v697 = vpack.c.b16 %v681, %v681
        %v698 = vpack.c.b16 %v682, %v682
        %v699 = vpack.c.b16 %v683, %v683
        %v700 = vpack.c.b16 %v684, %v684
        %v701 = vpack.c.b16 %v685, %v685
        %v702 = vpack.c.b16 %v686, %v686
        %v703 = vpack.c.b16 %v687, %v687
        %720 = vst [vmem:[%s220] sm:$0xf] %v688
        %721 = vst [vmem:[%s220 + $0x4] sm:$0xf] %v689
        %722 = vst [vmem:[%s220 + $0x8] sm:$0xf] %v690
        %723 = vst [vmem:[%s220 + $0xc] sm:$0xf] %v691
        %724 = vst [vmem:[%s220 + $0x10] sm:$0xf] %v692
        %725 = vst [vmem:[%s220 + $0x14] sm:$0xf] %v693
        %726 = vst [vmem:[%s220 + $0x18] sm:$0xf] %v694
        %727 = vst [vmem:[%s220 + $0x1c] sm:$0xf] %v695
        %728 = vst [vmem:[%s220 + $0x20] sm:$0xf] %v696
        %729 = vst [vmem:[%s220 + $0x24] sm:$0xf] %v697
        %730 = vst [vmem:[%s220 + $0x28] sm:$0xf] %v698
        %731 = vst [vmem:[%s220 + $0x2c] sm:$0xf] %v699
        %732 = vst [vmem:[%s220 + $0x30] sm:$0xf] %v700
        %733 = vst [vmem:[%s220 + $0x34] sm:$0xf] %v701
        %734 = vst [vmem:[%s220 + $0x38] sm:$0xf] %v702
        %735 = vst [vmem:[%s220 + $0x3c] sm:$0xf] %v703
        %s736 = sand.u32 %s139, 1
        %s737 = scalar_lea.sflag [#allocation5], %s736
        %s738 = sand.u32 %s139, 1
        %s739 = smul.addr %s738, 64
        %s740 = scalar_lea.vmem [#allocation4], %s739
        // Predicated region
        $region41: #{_node_df_call.1} parent=39 // pred_check
          %p741 = pneg %p149
        $region42: #{_node_df_call.1} parent=39 // pred_check_branch
          %743 = sbr.rel (%p741) target = $region44
        $region43: #{_node_df_call.1} parent=39 // pred_region
          %s744 = smul.u32 16, %s21
          %s746 = ssub.s32 1024, 1024
          %747 = vsyncadd %s737, %s746
          %s748 = smul.addr %s744, 64
          %s749 = scalar_lea.hbm %s6, %s748
          %s750 = sshll.u32 %s740, 4
          %s751 = int_to_ptr.vmem [resolvable:$true] %s750
          %756 = dma.vmem_to_hbm [thread:$0]  %s751, 1024, %s749, %s737, 64, 64, 4
        $region44: #{_node_df_call.1} parent=39 // pred_fallthru
          _
      $region40: #{_node_df_call.1} parent=5 // pred_fallthru
        _
      %p757 = scmp.le.s32.totalorder 2, %s16
      // Predicated region
      $region45: #{_node_df_call.1} parent=5 // pred_check
        %p758 = pneg %p757
      $region46: #{_node_df_call.1} parent=5 // pred_check_branch
        %760 = sbr.rel (%p758) target = $region48
      $region47: #{_node_df_call.1} parent=5 // pred_region
        %s761 = ssub.s32 %s16, 2
        // Predicated region
        $region49: #{_node_df_call.1} parent=47 // pred_check
          %p762 = pneg %p155
        $region50: #{_node_df_call.1} parent=47 // pred_check_branch
          %764 = sbr.rel (%p762) target = $region52
        $region51: #{_node_df_call.1} parent=47 // pred_region
          %s765 = sand.u32 %s140, 1
          %s766 = scalar_lea.sflag [#allocation5], %s765
          %s767 = sand.u32 %s140, 1
          %s768 = smul.addr %s767, 64
          %s769 = scalar_lea.vmem [#allocation4], %s768
          %770 = dma.done %s766, 1024
        $region52: #{_node_df_call.1} parent=47 // pred_fallthru
          _
      $region48: #{_node_df_call.1} parent=5 // pred_fallthru
        _
    $region6: #{_node_df_call.1} parent=1 // loop_footer
      %s20 = sadd.s32 1, %s16
    $region7: #{_node_df_call.1} parent=1 // loop_footer_branch
      %15 = sbr.rel target = $region3
    $region8: #{_node_df_call.1} parent=1 // loop_exit
      _
    %771 = vsyncpa [#allocation5], 1
    %s772 = scalar_lea.sflag [#allocation5], 1
    %773 = vsyncpa %s772, 1

</llo_original>
